<compile_context>
chip_gen: v7x
topology: tpu7x:2x2x1
jax: 0.10.0
libtpu: 0.0.40
codegen_flags: <defaults>
</compile_context>

<pallas_src>
import functools

import jax
import jax.numpy as jnp
from jax.experimental import pallas as pl
from jax.experimental.pallas import tpu as pltpu


def _round_up(x, m):
    return (x + m - 1) // m * m


def _linear_kernel(z_ref, wt_ref, b_ref, o_ref):
    # out = z @ W^T + b ; W^T is supplied pre-packed as (z_dim, h_pad).
    acc = jnp.dot(z_ref[...], wt_ref[...], preferred_element_type=jnp.float32)
    o_ref[...] = (acc + b_ref[...]).astype(o_ref.dtype)


def init_hidden_decoder_params(key, h_dim, z_dim, dtype=jnp.float32):
    """Deterministic init matching nn.Linear(z_dim, h_dim) default scheme.

    Returns the weight in PyTorch layout (h_dim, z_dim) and bias (h_dim,)."""
    k_w, k_b = jax.random.split(key)
    bound = 1.0 / jnp.sqrt(jnp.asarray(z_dim, dtype))
    weight = jax.random.uniform(k_w, (h_dim, z_dim), dtype, -bound, bound)
    bias = jax.random.uniform(k_b, (h_dim,), dtype, -bound, bound)
    return weight, bias


def prepare_decoder_params(weight, bias, lane=128):
    """One-time repack of the params into kernel layout.

    weight: (h_dim, z_dim) PyTorch layout -> wt: (z_dim, h_pad)  (transposed,
    lane-padded to a multiple of 128).  bias: (h_dim,) -> (1, h_pad).
    Do this once at model init, NOT per forward call."""
    h_dim, z_dim = weight.shape
    h_pad = _round_up(h_dim, lane)
    wt = jnp.pad(weight.T, ((0, 0), (0, h_pad - h_dim)))       # (z_dim, h_pad)
    b2 = jnp.pad(bias, (0, h_pad - h_dim)).reshape(1, h_pad)   # (1, h_pad)
    return wt, b2


@functools.partial(jax.jit, static_argnames=("h_dim",))
def hidden_decoder_forward(z, wt, b2, *, h_dim):
    """z: (B, z_dim); wt: (z_dim, h_pad) pre-packed; b2: (1, h_pad)."""
    B, z_dim = z.shape
    k_dim, h_pad = wt.shape
    assert k_dim == z_dim and h_pad % 128 == 0

    # --- tile selection ---------------------------------------------------
    # Batch tile: multiple of 8 sublanes (f32); cap at 256 rows for large B.
    tb = 256 if B >= 256 else _round_up(B, 8)
    # Output-lane tile: largest 128-multiple divisor of h_pad up to 512.
    if h_pad % 512 == 0:
        th = 512
    elif h_pad % 256 == 0:
        th = 256
    else:
        th = 128

    b_pad = _round_up(B, tb)
    if b_pad != B:
        z = jnp.pad(z, ((0, b_pad - B), (0, 0)))

    grid = (b_pad // tb, h_pad // th)

    itemsize = jnp.dtype(z.dtype).itemsize
    cost = pl.CostEstimate(
        flops=2 * b_pad * z_dim * h_pad,
        transcendentals=0,
        bytes_accessed=(b_pad * z_dim + z_dim * h_pad + h_pad
                        + b_pad * h_pad) * itemsize,
    )

    out = pl.pallas_call(
        _linear_kernel,
        out_shape=jax.ShapeDtypeStruct((b_pad, h_pad), z.dtype),
        grid_spec=pltpu.PrefetchScalarGridSpec(
            num_scalar_prefetch=0,
            grid=grid,
            in_specs=[
                # z tile depends only on the batch grid axis.
                pl.BlockSpec((tb, z_dim), lambda i, j: (i, 0)),
                # weight tile depends only on the h grid axis -> no re-DMA
                # along the batch axis.
                pl.BlockSpec((z_dim, th), lambda i, j: (0, j)),
                pl.BlockSpec((1, th), lambda i, j: (0, j)),
            ],
            out_specs=pl.BlockSpec((tb, th), lambda i, j: (i, j)),
        ),
        compiler_params=pltpu.CompilerParams(
            dimension_semantics=("parallel", "parallel"),
        ),
        cost_estimate=cost,
    )(z, wt, b2)

    return out[:B, :h_dim]


if __name__ == "__main__":
    key = jax.random.PRNGKey(0)
    k_z, k_p = jax.random.split(key)

    B, z_dim, h_dim = 8, 16, 32       # small shapes consistent with the module
    z = jax.random.normal(k_z, (B, z_dim), dtype=jnp.float32)
    weight, bias = init_hidden_decoder_params(k_p, h_dim, z_dim)

    # One-time repack (transpose + lane padding) outside the forward hot path.
    wt, b2 = prepare_decoder_params(weight, bias)

    out = hidden_decoder_forward(z, wt, b2, h_dim=h_dim)
    out = jax.block_until_ready(out)

    # correctness check against plain JAX reference of the Linear layer
    ref = z @ weight.T + bias
    assert out.shape == (B, h_dim)
    assert jnp.allclose(out, ref, atol=1e-5, rtol=1e-5)

    print("KERNEL_OK")
</pallas_src>

<mosaic_0001>
module attributes {stable_mosaic.version = 11 : i64} {
  func.func @_linear_kernel(%arg0: i32, %arg1: i32, %arg2: memref<8x16xf32, #tpu.memory_space<vmem>>, %arg3: memref<16x128xf32, #tpu.memory_space<vmem>>, %arg4: memref<1x128xf32, #tpu.memory_space<vmem>>, %arg5: memref<8x128xf32, #tpu.memory_space<vmem>>) attributes {dimension_semantics = [#tpu.dimension_semantics<parallel>, #tpu.dimension_semantics<parallel>], iteration_bounds = array<i64: 1, 1>, scalar_prefetch = 0 : i64, scratch_operands = 0 : i64, tpu.core_type = #tpu.core_type<tc>, window_params = [{transform_indices = @transform_0, window_bounds = array<i64: 8, 16>}, {transform_indices = @transform_1, window_bounds = array<i64: 16, 128>}, {transform_indices = @transform_2, window_bounds = array<i64: 1, 128>}, {transform_indices = @transform_3, window_bounds = array<i64: 8, 128>}]} {
    %c0 = arith.constant 0 : index
    %c0_0 = arith.constant 0 : index
    %0 = vector.load %arg2[%c0, %c0_0] : memref<8x16xf32, #tpu.memory_space<vmem>>, vector<8x16xf32>
    %c0_1 = arith.constant 0 : index
    %c0_2 = arith.constant 0 : index
    %1 = vector.load %arg3[%c0_1, %c0_2] : memref<16x128xf32, #tpu.memory_space<vmem>>, vector<16x128xf32>
    %cst = arith.constant dense<0.000000e+00> : vector<8x128xf32>
    %2 = tpu.matmul %0, %1, %cst {dimension_numbers = #tpu.dot_dimension_numbers<[1], [0], [0], [1], [0, 0, 1, 1], [], []>} : vector<8x16xf32>, vector<16x128xf32>, vector<8x128xf32> -> vector<8x128xf32>
    %c0_3 = arith.constant 0 : index
    %c0_4 = arith.constant 0 : index
    %3 = vector.load %arg4[%c0_3, %c0_4] : memref<1x128xf32, #tpu.memory_space<vmem>>, vector<1x128xf32>
    %4 = vector.broadcast %3 : vector<1x128xf32> to vector<8x128xf32>
    %5 = arith.addf %2, %4 : vector<8x128xf32>
    %c0_5 = arith.constant 0 : index
    %c0_6 = arith.constant 0 : index
    %6 = vector.load %arg5[%c0_5, %c0_6] : memref<8x128xf32, #tpu.memory_space<vmem>>, vector<8x128xf32>
    tpu.vector_store %arg5[%c0_5, %c0_6], %5 {strides = array<i32>} : memref<8x128xf32, #tpu.memory_space<vmem>>, vector<8x128xf32>,
    return
  }
  func.func @transform_0(%arg0: i32, %arg1: i32) -> (i32, i32) {
    %c0_i32 = arith.constant 0 : i32
    %c0_i32_0 = arith.constant 0 : i32
    return %arg0, %c0_i32 : i32, i32
  }
  func.func @transform_1(%arg0: i32, %arg1: i32) -> (i32, i32) {
    %c0_i32 = arith.constant 0 : i32
    %c0_i32_0 = arith.constant 0 : i32
    return %c0_i32, %arg1 : i32, i32
  }
  func.func @transform_2(%arg0: i32, %arg1: i32) -> (i32, i32) {
    %c0_i32 = arith.constant 0 : i32
    %c0_i32_0 = arith.constant 0 : i32
    return %c0_i32, %arg1 : i32, i32
  }
  func.func @transform_3(%arg0: i32, %arg1: i32) -> (i32, i32) {
    %c0_i32 = arith.constant 0 : i32
    return %arg0, %arg1 : i32, i32
  }
}

</mosaic_0001>

<llo_original>
// kernel: hidden_decoder_forward.1
$region0: #{hidden_decoder_forward.1}
  #allocation0 [shape = 'u32[]', space=smem, size = 0x4, offset = 0x4, fixed_abs, tag = 'smem constant byte address 0x4 - core index']
  #allocation1 [shape = 'u32[144,128]{1,0:T(1,128)}', space=vmem, size = 0x12000, scoped, tag = 'internal scratch']
  %s0 = inlined_call_operand.hbm [shape: f32[8,16], index: 0, kind: input, shape index: {}]
  %s1 = inlined_call_operand.hbm [shape: f32[16,128], index: 1, kind: input, shape index: {}]
  %s2 = inlined_call_operand.vmem [shape: f32[1,128], index: 2, kind: input, shape index: {}]
  %s3 = inlined_call_operand.hbm [shape: f32[8,128], index: 3, kind: output, shape index: {}]
  %s4 = sld [smem:[#allocation0]]
  $region30: #{hidden_decoder_forward.1} parent=0
    _
  %s6 = ssub.s32 1, %s4
  %s7 = scalar_select 0, %s6, %s4
  $region1: #{hidden_decoder_forward.1} parent=0
    #allocation2 [shape = 'u8[4096]{0}', space=vmem, size = 0x1000, scoped, tag = 'input window, operand 0, single buffered']
    #allocation3 [shape = 's32[1]{0}', space=sflag, size = 0x4, scoped, tag = 'scoped memory for hidden_decoder_forward.1']
    #allocation4 [shape = 's32[1]{0}', space=sflag, size = 0x4, scoped, tag = 'scoped memory for hidden_decoder_forward.1']
    #allocation5 [shape = 'u8[8192]{0}', space=vmem, size = 0x2000, scoped, tag = 'input window, operand 1, single buffered']
    #allocation6 [shape = 's32[1]{0}', space=sflag, size = 0x4, scoped, tag = 'scoped memory for hidden_decoder_forward.1']
    #allocation7 [shape = 'u8[4096]{0}', space=vmem, size = 0x1000, scoped, tag = 'output window, operand 0, single buffered']
    %8 = vsyncpa [#allocation3], 0
    %9 = vsyncpa [#allocation6], 0
    %10 = vsyncpa [#allocation4], 0
    // Predicated region
    $region2: #{hidden_decoder_forward.1} parent=1 // pred_check
      _
    $region3: #{hidden_decoder_forward.1} parent=1 // pred_check_branch
      %12 = sbr.rel (0) target = $region5
    $region4: #{hidden_decoder_forward.1} parent=1 // pred_region
      %s14 = ssub.s32 128, 128
      %15 = vsyncadd [#allocation3], %s14
      %s17 = sshll.u32 [#allocation2], 4
      %s18 = int_to_ptr.vmem [resolvable:$true] %s17
      %20 = dma.hbm_to_vmem [thread:$0]  %s0, 128, %s18, [#allocation3]
    $region5: #{hidden_decoder_forward.1} parent=1 // pred_fallthru
      _
    // Predicated region
    $region6: #{hidden_decoder_forward.1} parent=1 // pred_check
      _
    $region7: #{hidden_decoder_forward.1} parent=1 // pred_check_branch
      %22 = sbr.rel (0) target = $region9
    $region8: #{hidden_decoder_forward.1} parent=1 // pred_region
      %s24 = ssub.s32 256, 256
      %25 = vsyncadd [#allocation6], %s24
      %s26 = sshll.u32 [#allocation5], 4
      %s27 = int_to_ptr.vmem [resolvable:$true] %s26
      %32 = dma.hbm_to_vmem [thread:$0]  %s1, 256, %s27, [#allocation6], 128, 128, 8
    $region9: #{hidden_decoder_forward.1} parent=1 // pred_fallthru
      _
    // Predicated region
    $region10: #{hidden_decoder_forward.1} parent=1 // pred_check
      _
    $region11: #{hidden_decoder_forward.1} parent=1 // pred_check_branch
      %34 = sbr.rel (0) target = $region13
    $region12: #{hidden_decoder_forward.1} parent=1 // pred_region
      _
    $region13: #{hidden_decoder_forward.1} parent=1 // pred_fallthru
      _
    // Predicated region
    $region14: #{hidden_decoder_forward.1} parent=1 // pred_check
      _
    $region15: #{hidden_decoder_forward.1} parent=1 // pred_check_branch
      %36 = sbr.rel (0) target = $region17
    $region16: #{hidden_decoder_forward.1} parent=1 // pred_region
      %37 = dma.done [#allocation3], 128
    $region17: #{hidden_decoder_forward.1} parent=1 // pred_fallthru
      _
    // Predicated region
    $region18: #{hidden_decoder_forward.1} parent=1 // pred_check
      _
    $region19: #{hidden_decoder_forward.1} parent=1 // pred_check_branch
      %39 = sbr.rel (0) target = $region21
    $region20: #{hidden_decoder_forward.1} parent=1 // pred_region
      %40 = dma.done [#allocation6], 256
    $region21: #{hidden_decoder_forward.1} parent=1 // pred_fallthru
      _
    %v41 = vld [vmem:[#allocation2] sm:$0xff]
    %v42 = vld [vmem:[#allocation5] sm:$0xff]
    %v43 = vld [vmem:[#allocation5 + $0x8] sm:$0xff]
    %v44 = vld [vmem:[%s2] sm:$0x1]
    %v46 = vlaneseq
    %v47 = vshrl.u32 %v46, 7
    %v48 = vsub.s32 0, %v47
    %v49 = vrot.slane %v44, %v48
    %vm51 = vcmask 130048
    %v53 = vsel %vm51, %v41, 0
    %55 = vmatprep.subr.mxu0 0.0
    %56 = vmatpush1.msra.mxu0 %v42
    %57 = vmatprep.subr.mxu0 0.0
    %58 = vmatpush1.msra.mxu0 %v43
    %59 = vmatprep.subr.mxu0 0.0
    %60 = vmatpush1.msra.mxu0 0.0
    %61 = vmatprep.subr.mxu0 0.0
    %62 = vmatpush1.msra.mxu0 0.0
    %63 = vmatprep.subr.mxu0 0.0
    %64 = vmatpush1.msra.mxu0 0.0
    %65 = vmatprep.subr.mxu0 0.0
    %66 = vmatpush1.msra.mxu0 0.0
    %67 = vmatprep.subr.mxu0 0.0
    %68 = vmatpush1.msra.mxu0 0.0
    %69 = vmatprep.subr.mxu0 0.0
    %70 = vmatpush1.msra.mxu0 0.0
    %71 = vmatprep.subr.mxu0 0.0
    %72 = vmatpush1.msra.mxu0 0.0
    %73 = vmatprep.subr.mxu0 0.0
    %74 = vmatpush1.msra.mxu0 0.0
    %75 = vmatprep.subr.mxu0 0.0
    %76 = vmatpush1.msra.mxu0 0.0
    %77 = vmatprep.subr.mxu0 0.0
    %78 = vmatpush1.msra.mxu0 0.0
    %79 = vmatprep.subr.mxu0 0.0
    %80 = vmatpush1.msra.mxu0 0.0
    %81 = vmatprep.subr.mxu0 0.0
    %82 = vmatpush1.msra.mxu0 0.0
    %83 = vmatprep.subr.mxu0 0.0
    %84 = vmatpush1.msra.mxu0 0.0
    %85 = vmatprep.subr.mxu0 0.0
    %86 = vmatpush1.msra.mxu0 0.0
    %87 = vmatprep.subr.mxu0 0.0
    %88 = vmatpush1.msra.mxu0 0.0
    %89 = vmatprep.subr.mxu0 0.0
    %90 = vmatpush1.msra.mxu0 0.0
    %91 = vmatprep.subr.mxu0 0.0
    %92 = vmatpush1.msra.mxu0 0.0
    %93 = vmatprep.subr.mxu0 0.0
    %94 = vmatpush1.msra.mxu0 0.0
    %95 = vmatprep.subr.mxu0 0.0
    %96 = vmatpush1.msra.mxu0 0.0
    %97 = vmatprep.subr.mxu0 0.0
    %98 = vmatpush1.msra.mxu0 0.0
    %99 = vmatprep.subr.mxu0 0.0
    %100 = vmatpush1.msra.mxu0 0.0
    %101 = vmatprep.subr.mxu0 0.0
    %102 = vmatpush1.msra.mxu0 0.0
    %103 = vmatprep.subr.mxu0 0.0
    %104 = vmatpush1.msra.mxu0 0.0
    %105 = vmatprep.subr.mxu0 0.0
    %106 = vmatpush1.msra.mxu0 0.0
    %107 = vmatprep.subr.mxu0 0.0
    %108 = vmatpush1.msra.mxu0 0.0
    %109 = vmatprep.subr.mxu0 0.0
    %110 = vmatpush1.msra.mxu0 0.0
    %111 = vmatprep.subr.mxu0 0.0
    %112 = vmatpush1.msra.mxu0 0.0
    %113 = vmatprep.subr.mxu0 0.0
    %114 = vmatpush1.msra.mxu0 0.0
    %115 = vmatprep.subr.mxu0 0.0
    %116 = vmatpush1.msra.mxu0 0.0
    %117 = vmatprep.subr.mxu0 0.0
    %118 = vmatpush1.msra.mxu0 0.0
    %119 = vmatprep.mubr.f32.mxu0 0.0
    %120 = vmatmul.mubr.f32.gmra.mrb[0].mxu0 %v53
    %v121 = vpop.f32.mrb[0].mxu0
    %v122 = vadd.f32 %v49, %v121
    %v123 = vpop.f32.mrb[0].mxu0
    %124 = vdwg.mxu0
    %125 = vst [vmem:[#allocation7] sm:$0xff] %v122
    // Predicated region
    $region22: #{hidden_decoder_forward.1} parent=1 // pred_check
      _
    $region23: #{hidden_decoder_forward.1} parent=1 // pred_check_branch
      %127 = sbr.rel (0) target = $region25
    $region24: #{hidden_decoder_forward.1} parent=1 // pred_region
      %s129 = ssub.s32 128, 128
      %130 = vsyncadd [#allocation4], %s129
      %s132 = sshll.u32 [#allocation7], 4
      %s133 = int_to_ptr.vmem [resolvable:$true] %s132
      %135 = dma.vmem_to_hbm [thread:$0]  %s133, 128, %s3, [#allocation4]
    $region25: #{hidden_decoder_forward.1} parent=1 // pred_fallthru
      _
    // Predicated region
    $region26: #{hidden_decoder_forward.1} parent=1 // pred_check
      _
    $region27: #{hidden_decoder_forward.1} parent=1 // pred_check_branch
      %137 = sbr.rel (0) target = $region29
    $region28: #{hidden_decoder_forward.1} parent=1 // pred_region
      %138 = dma.done [#allocation4], 128
    $region29: #{hidden_decoder_forward.1} parent=1 // pred_fallthru
      _
    %139 = vsyncpa [#allocation3], 1
    %140 = vsyncpa [#allocation6], 1
    %141 = vsyncpa [#allocation4], 1

</llo_original>
